<compile_context>
chip_gen: v7x
topology: tpu7x:2x2x1
jax: 0.10.0
libtpu: 0.0.40
codegen_flags: <defaults>
</compile_context>

<pallas_src>
import functools

import jax
import jax.numpy as jnp
from jax import lax
from jax.experimental import pallas as pl
from jax.experimental.pallas import tpu as pltpu


def _linear_kernel_single_k(z_ref, w_ref, b_ref, o_ref):
    """One (tm, tn) output tile, whole K in one block: no accumulator scratch."""
    acc = lax.dot_general(
        z_ref[...], w_ref[...],
        dimension_numbers=(((1,), (1,)), ((), ())),  # contract last (K) dims
        preferred_element_type=jnp.float32,
    )
    o_ref[...] = (acc + b_ref[...]).astype(o_ref.dtype)


def _linear_kernel_multi_k(z_ref, w_ref, b_ref, o_ref, acc_ref):
    """One (tm, tn) output tile, accumulated over the K grid axis."""
    k = pl.program_id(2)

    @pl.when(k == 0)
    def _init():
        acc_ref[...] = jnp.zeros_like(acc_ref)

    acc_ref[...] += lax.dot_general(
        z_ref[...], w_ref[...],
        dimension_numbers=(((1,), (1,)), ((), ())),
        preferred_element_type=jnp.float32,
    )

    @pl.when(k == pl.num_programs(2) - 1)
    def _finalize():
        # Bias add only once per output tile, in the epilogue.
        o_ref[...] = (acc_ref[...] + b_ref[...]).astype(o_ref.dtype)


def _round_up(x, m):
    return ((x + m - 1) // m) * m


def _choose_tile(dim, gran, max_tile):
    """Return (tile, padded_dim).

    If the dim fits in one block, use the full dim (no padding, full-dim block
    exemption from the (8,128) rule).  Otherwise pad only to `gran` and pick the
    largest granularity-multiple tile <= max_tile that exactly divides it.
    """
    if dim <= max_tile:
        return dim, dim
    padded = _round_up(dim, gran)
    tile = (max_tile // gran) * gran
    while tile > gran and padded % tile != 0:
        tile -= gran
    return tile, padded


@functools.partial(
    jax.jit, static_argnames=("compute_dtype", "max_tm", "max_tn", "max_tk")
)
def mlp_projection_head(z, weight, bias, *, compute_dtype=None,
                        max_tm=512, max_tn=512, max_tk=1024):
    """Pallas forward of MLPProjectionHead (fc2 only).

    z      : [B, input_dim]
    weight : [d_h, input_dim]   (PyTorch nn.Linear layout, used as-is: no transpose)
    bias   : [d_h]
    compute_dtype : optional dtype (e.g. jnp.bfloat16) fed to the MXU;
                    accumulation and bias stay f32, output dtype matches z.
    returns: [B, d_h]
    """
    B, K = z.shape
    N, K_w = weight.shape
    assert K_w == K, "weight must be [d_h, input_dim]"
    out_dtype = z.dtype

    if compute_dtype is None:
        compute_dtype = z.dtype
    compute_dtype = jnp.dtype(compute_dtype)

    # Tiles as exact divisors of minimally-padded dims (pad only to 8 / 128).
    tm, Bp = _choose_tile(B, 8, max_tm)
    tn, Np = _choose_tile(N, 128, max_tn)
    tk, Kp = _choose_tile(K, 128, max_tk)

    grid_m, grid_n, grid_k = Bp // tm, Np // tn, Kp // tk

    # Megacore (v7x): make sure there are >= 2 parallel output blocks when this
    # can be done without breaking 8/128 granularity; neutral on v5e/v6e
    # (the revisited block is not re-DMA'd, only ~0.35 us extra step overhead).
    if grid_m * grid_n == 1:
        if tm % 16 == 0:
            tm //= 2
            grid_m = Bp // tm
        elif tn % 256 == 0:
            tn //= 2
            grid_n = Np // tn

    # Pad only when actually needed (zero padding is numerically exact here).
    if (Bp, Kp) == (B, K):
        z_in = z.astype(compute_dtype)
    else:
        z_in = jnp.zeros((Bp, Kp), compute_dtype).at[:B, :K].set(
            z.astype(compute_dtype))
    if (Np, Kp) == (N, K):
        w_in = weight.astype(compute_dtype)          # native [N, K] layout
    else:
        w_in = jnp.zeros((Np, Kp), compute_dtype).at[:N, :K].set(
            weight.astype(compute_dtype))
    if Np == N:
        b_in = bias.astype(jnp.float32).reshape(1, N)
    else:
        b_in = jnp.zeros((1, Np), jnp.float32).at[0, :N].set(
            bias.astype(jnp.float32))

    if grid_k == 1:
        # Fast path: whole K in one block -> no accumulator scratch, no branches.
        # Pick the grid order so the *larger* operand is streamed from HBM once
        # (its block index only changes on the outer axis).
        z_bytes = Bp * Kp * compute_dtype.itemsize
        w_bytes = Np * Kp * compute_dtype.itemsize
        n_outer = w_bytes * (grid_m - 1) > z_bytes * (grid_n - 1)
        if n_outer:
            grid = (grid_n, grid_m)
            z_map = lambda j, i: (i, 0)
            w_map = lambda j, i: (j, 0)
            b_map = lambda j, i: (0, j)
            o_map = lambda j, i: (i, j)
        else:
            grid = (grid_m, grid_n)
            z_map = lambda i, j: (i, 0)
            w_map = lambda i, j: (j, 0)
            b_map = lambda i, j: (0, j)
            o_map = lambda i, j: (i, j)

        out_p = pl.pallas_call(
            _linear_kernel_single_k,
            out_shape=jax.ShapeDtypeStruct((Bp, Np), out_dtype),
            grid=grid,
            in_specs=[
                pl.BlockSpec((tm, tk), z_map),   # z tile   [tm, tk]
                pl.BlockSpec((tn, tk), w_map),   # W tile   [tn, tk] (native layout)
                pl.BlockSpec((1, tn), b_map),    # bias row [1, tn]
            ],
            out_specs=pl.BlockSpec((tm, tn), o_map),
            compiler_params=pltpu.CompilerParams(
                dimension_semantics=("parallel", "parallel"),
            ),
        )(z_in, w_in, b_in)
    else:
        out_p = pl.pallas_call(
            _linear_kernel_multi_k,
            out_shape=jax.ShapeDtypeStruct((Bp, Np), out_dtype),
            grid=(grid_m, grid_n, grid_k),       # reduction axis last
            in_specs=[
                pl.BlockSpec((tm, tk), lambda i, j, k: (i, k)),
                pl.BlockSpec((tn, tk), lambda i, j, k: (j, k)),
                pl.BlockSpec((1, tn), lambda i, j, k: (0, j)),
            ],
            out_specs=pl.BlockSpec((tm, tn), lambda i, j, k: (i, j)),
            scratch_shapes=[pltpu.VMEM((tm, tn), jnp.float32)],
            compiler_params=pltpu.CompilerParams(
                dimension_semantics=("parallel", "parallel", "arbitrary"),
            ),
        )(z_in, w_in, b_in)

    if Bp == B and Np == N:
        return out_p                      # no epilogue slice copy
    return out_p[:B, :N]


if __name__ == "__main__":
    key = jax.random.PRNGKey(0)
    kz, kw, kb, kz2, kz3 = jax.random.split(key, 5)

    # --- Case 1: small shapes typical of the module (strict f32 check) ---------
    batch, input_dim, d_h = 8, 32, 16
    z = jax.random.normal(kz, (batch, input_dim), dtype=jnp.float32)
    w = jax.random.normal(kw, (d_h, input_dim), dtype=jnp.float32) * 0.1
    b = jax.random.normal(kb, (d_h,), dtype=jnp.float32) * 0.1

    out = jax.block_until_ready(mlp_projection_head(z, w, b))
    ref = z @ w.T + b[None, :]
    assert out.shape == (batch, d_h)
    assert jnp.allclose(out, ref, atol=1e-5, rtol=1e-5), "f32 small-shape mismatch"

    # --- Case 2: non-tile-multiple shapes -> full-K single-block fast path ------
    B2, K2, N2 = 512, 640, 384
    z2 = jax.random.normal(kz2, (B2, K2), dtype=jnp.float32)
    w2 = jax.random.normal(kw, (N2, K2), dtype=jnp.float32) * 0.05
    b2 = jax.random.normal(kb, (N2,), dtype=jnp.float32) * 0.05

    out2 = jax.block_until_ready(mlp_projection_head(z2, w2, b2))
    ref2 = z2 @ w2.T + b2[None, :]
    assert out2.shape == (B2, N2)
    assert jnp.allclose(out2, ref2, atol=1e-4, rtol=1e-4), "f32 single-K mismatch"

    # --- Case 3: bf16-fed MXU path (f32 accumulation), vs bf16-cast reference ---
    out3 = jax.block_until_ready(
        mlp_projection_head(z2, w2, b2, compute_dtype=jnp.bfloat16)
    )
    z2b = z2.astype(jnp.bfloat16).astype(jnp.float32)
    w2b = w2.astype(jnp.bfloat16).astype(jnp.float32)
    ref3 = z2b @ w2b.T + b2[None, :]
    assert jnp.allclose(out3, ref3, atol=1e-2, rtol=1e-2), "bf16 path mismatch"

    # --- Case 4: K large enough to force the multi-K accumulator path -----------
    B4, K4, N4 = 256, 2560, 384        # Kp=2560 -> tk=640, grid_k=4
    z4 = jax.random.normal(kz3, (B4, K4), dtype=jnp.float32)
    w4 = jax.random.normal(kw, (N4, K4), dtype=jnp.float32) * 0.02
    b4 = jax.random.normal(kb, (N4,), dtype=jnp.float32) * 0.02

    out4 = jax.block_until_ready(mlp_projection_head(z4, w4, b4))
    ref4 = z4 @ w4.T + b4[None, :]
    assert out4.shape == (B4, N4)
    assert jnp.allclose(out4, ref4, atol=1e-3, rtol=1e-3), "f32 multi-K mismatch"

    print("KERNEL_OK")
</pallas_src>

<mosaic_0001>
module attributes {stable_mosaic.version = 11 : i64} {
  func.func @_linear_kernel_single_k(%arg0: i32, %arg1: i32, %arg2: memref<8x32xf32, #tpu.memory_space<vmem>>, %arg3: memref<16x32xf32, #tpu.memory_space<vmem>>, %arg4: memref<1x16xf32, #tpu.memory_space<vmem>>, %arg5: memref<8x16xf32, #tpu.memory_space<vmem>>) attributes {dimension_semantics = [#tpu.dimension_semantics<parallel>, #tpu.dimension_semantics<parallel>], iteration_bounds = array<i64: 1, 1>, scalar_prefetch = 0 : i64, scratch_operands = 0 : i64, tpu.core_type = #tpu.core_type<tc>, window_params = [{transform_indices = @transform_0, window_bounds = array<i64: 8, 32>}, {transform_indices = @transform_1, window_bounds = array<i64: 16, 32>}, {transform_indices = @transform_2, window_bounds = array<i64: 1, 16>}, {transform_indices = @transform_3, window_bounds = array<i64: 8, 16>}]} {
    %c0 = arith.constant 0 : index
    %c0_0 = arith.constant 0 : index
    %0 = vector.load %arg2[%c0, %c0_0] : memref<8x32xf32, #tpu.memory_space<vmem>>, vector<8x32xf32>
    %c0_1 = arith.constant 0 : index
    %c0_2 = arith.constant 0 : index
    %1 = vector.load %arg3[%c0_1, %c0_2] : memref<16x32xf32, #tpu.memory_space<vmem>>, vector<16x32xf32>
    %cst = arith.constant dense<0.000000e+00> : vector<8x16xf32>
    %2 = tpu.matmul %0, %1, %cst {dimension_numbers = #tpu.dot_dimension_numbers<[1], [1], [0], [0], [0, 0, 1, 0], [], []>} : vector<8x32xf32>, vector<16x32xf32>, vector<8x16xf32> -> vector<8x16xf32>
    %c0_3 = arith.constant 0 : index
    %c0_4 = arith.constant 0 : index
    %3 = vector.load %arg4[%c0_3, %c0_4] : memref<1x16xf32, #tpu.memory_space<vmem>>, vector<1x16xf32>
    %4 = vector.broadcast %3 : vector<1x16xf32> to vector<8x16xf32>
    %5 = arith.addf %2, %4 : vector<8x16xf32>
    %c0_5 = arith.constant 0 : index
    %c0_6 = arith.constant 0 : index
    %6 = vector.load %arg5[%c0_5, %c0_6] : memref<8x16xf32, #tpu.memory_space<vmem>>, vector<8x16xf32>
    tpu.vector_store %arg5[%c0_5, %c0_6], %5 {strides = array<i32>} : memref<8x16xf32, #tpu.memory_space<vmem>>, vector<8x16xf32>,
    return
  }
  func.func @transform_0(%arg0: i32, %arg1: i32) -> (i32, i32) {
    %c0_i32 = arith.constant 0 : i32
    %c0_i32_0 = arith.constant 0 : i32
    return %arg0, %c0_i32 : i32, i32
  }
  func.func @transform_1(%arg0: i32, %arg1: i32) -> (i32, i32) {
    %c0_i32 = arith.constant 0 : i32
    %c0_i32_0 = arith.constant 0 : i32
    return %arg1, %c0_i32 : i32, i32
  }
  func.func @transform_2(%arg0: i32, %arg1: i32) -> (i32, i32) {
    %c0_i32 = arith.constant 0 : i32
    %c0_i32_0 = arith.constant 0 : i32
    return %c0_i32, %arg1 : i32, i32
  }
  func.func @transform_3(%arg0: i32, %arg1: i32) -> (i32, i32) {
    %c0_i32 = arith.constant 0 : i32
    return %arg0, %arg1 : i32, i32
  }
}

</mosaic_0001>

<llo_original>
// kernel: mlp_projection_head.1
$region0: #{mlp_projection_head.1}
  #allocation0 [shape = 'u32[]', space=smem, size = 0x4, offset = 0x4, fixed_abs, tag = 'smem constant byte address 0x4 - core index']
  #allocation1 [shape = 'u32[144,128]{1,0:T(1,128)}', space=vmem, size = 0x12000, scoped, tag = 'internal scratch']
  %s0 = inlined_call_operand.hbm [shape: f32[8,32], index: 0, kind: input, shape index: {}]
  %s1 = inlined_call_operand.hbm [shape: f32[16,32], index: 1, kind: input, shape index: {}]
  %s2 = inlined_call_operand.vmem [shape: f32[1,16], index: 2, kind: input, shape index: {}]
  %s3 = inlined_call_operand.hbm [shape: f32[8,16], index: 3, kind: output, shape index: {}]
  %s4 = sld [smem:[#allocation0]]
  $region30: #{mlp_projection_head.1} parent=0
    _
  %s6 = ssub.s32 1, %s4
  %s7 = scalar_select 0, %s6, %s4
  $region1: #{mlp_projection_head.1} parent=0
    #allocation2 [shape = 'u8[4096]{0}', space=vmem, size = 0x1000, scoped, tag = 'input window, operand 0, single buffered']
    #allocation3 [shape = 's32[1]{0}', space=sflag, size = 0x4, scoped, tag = 'scoped memory for mlp_projection_head.1']
    #allocation4 [shape = 's32[1]{0}', space=sflag, size = 0x4, scoped, tag = 'scoped memory for mlp_projection_head.1']
    #allocation5 [shape = 'u8[8192]{0}', space=vmem, size = 0x2000, scoped, tag = 'input window, operand 1, single buffered']
    #allocation6 [shape = 's32[1]{0}', space=sflag, size = 0x4, scoped, tag = 'scoped memory for mlp_projection_head.1']
    #allocation7 [shape = 'u8[4096]{0}', space=vmem, size = 0x1000, scoped, tag = 'output window, operand 0, single buffered']
    %8 = vsyncpa [#allocation3], 0
    %9 = vsyncpa [#allocation6], 0
    %10 = vsyncpa [#allocation4], 0
    // Predicated region
    $region2: #{mlp_projection_head.1} parent=1 // pred_check
      _
    $region3: #{mlp_projection_head.1} parent=1 // pred_check_branch
      %12 = sbr.rel (0) target = $region5
    $region4: #{mlp_projection_head.1} parent=1 // pred_region
      %s14 = ssub.s32 128, 128
      %15 = vsyncadd [#allocation3], %s14
      %s17 = sshll.u32 [#allocation2], 4
      %s18 = int_to_ptr.vmem [resolvable:$true] %s17
      %20 = dma.hbm_to_vmem [thread:$0]  %s0, 128, %s18, [#allocation3]
    $region5: #{mlp_projection_head.1} parent=1 // pred_fallthru
      _
    // Predicated region
    $region6: #{mlp_projection_head.1} parent=1 // pred_check
      _
    $region7: #{mlp_projection_head.1} parent=1 // pred_check_branch
      %22 = sbr.rel (0) target = $region9
    $region8: #{mlp_projection_head.1} parent=1 // pred_region
      %s24 = ssub.s32 256, 256
      %25 = vsyncadd [#allocation6], %s24
      %s26 = sshll.u32 [#allocation5], 4
      %s27 = int_to_ptr.vmem [resolvable:$true] %s26
      %32 = dma.hbm_to_vmem [thread:$0]  %s1, 256, %s27, [#allocation6], 128, 128, 8
    $region9: #{mlp_projection_head.1} parent=1 // pred_fallthru
      _
    // Predicated region
    $region10: #{mlp_projection_head.1} parent=1 // pred_check
      _
    $region11: #{mlp_projection_head.1} parent=1 // pred_check_branch
      %34 = sbr.rel (0) target = $region13
    $region12: #{mlp_projection_head.1} parent=1 // pred_region
      _
    $region13: #{mlp_projection_head.1} parent=1 // pred_fallthru
      _
    // Predicated region
    $region14: #{mlp_projection_head.1} parent=1 // pred_check
      _
    $region15: #{mlp_projection_head.1} parent=1 // pred_check_branch
      %36 = sbr.rel (0) target = $region17
    $region16: #{mlp_projection_head.1} parent=1 // pred_region
      %37 = dma.done [#allocation3], 128
    $region17: #{mlp_projection_head.1} parent=1 // pred_fallthru
      _
    // Predicated region
    $region18: #{mlp_projection_head.1} parent=1 // pred_check
      _
    $region19: #{mlp_projection_head.1} parent=1 // pred_check_branch
      %39 = sbr.rel (0) target = $region21
    $region20: #{mlp_projection_head.1} parent=1 // pred_region
      %40 = dma.done [#allocation6], 256
    $region21: #{mlp_projection_head.1} parent=1 // pred_fallthru
      _
    %v41 = vld [vmem:[#allocation2] sm:$0xff]
    %v42 = vld [vmem:[#allocation5] sm:$0xff]
    %v43 = vld [vmem:[#allocation5 + $0x8] sm:$0xff]
    %v44 = vld [vmem:[%s2] sm:$0x1]
    %v46 = vlaneseq
    %v47 = vshrl.u32 %v46, 7
    %v48 = vsub.s32 0, %v47
    %v49 = vrot.slane %v44, %v48
    %vm51 = vcmask 261120
    %v53 = vsel %vm51, %v41, 0
    %v56 = vsel %vm51, %v42, 0
    %v59 = vsel %vm51, %v43, 0
    %61 = vmatprep.subr.mxu0 0.0
    %62 = vmatpush1.xpose.msra.mxu0 %v56
    %63 = vmatprep.subr.mxu0 0.0
    %64 = vmatpush1.xpose.msra.mxu0 %v59
    %65 = vmatprep.subr.mxu0 0.0
    %66 = vmatpush1.xpose.msra.mxu0 0.0
    %67 = vmatprep.subr.mxu0 0.0
    %68 = vmatpush1.xpose.msra.mxu0 0.0
    %69 = vmatprep.subr.mxu0 0.0
    %70 = vmatpush1.xpose.msra.mxu0 0.0
    %71 = vmatprep.subr.mxu0 0.0
    %72 = vmatpush1.xpose.msra.mxu0 0.0
    %73 = vmatprep.subr.mxu0 0.0
    %74 = vmatpush1.xpose.msra.mxu0 0.0
    %75 = vmatprep.subr.mxu0 0.0
    %76 = vmatpush1.xpose.msra.mxu0 0.0
    %77 = vmatprep.subr.mxu0 0.0
    %78 = vmatpush1.xpose.msra.mxu0 0.0
    %79 = vmatprep.subr.mxu0 0.0
    %80 = vmatpush1.xpose.msra.mxu0 0.0
    %81 = vmatprep.subr.mxu0 0.0
    %82 = vmatpush1.xpose.msra.mxu0 0.0
    %83 = vmatprep.subr.mxu0 0.0
    %84 = vmatpush1.xpose.msra.mxu0 0.0
    %85 = vmatprep.subr.mxu0 0.0
    %86 = vmatpush1.xpose.msra.mxu0 0.0
    %87 = vmatprep.subr.mxu0 0.0
    %88 = vmatpush1.xpose.msra.mxu0 0.0
    %89 = vmatprep.subr.mxu0 0.0
    %90 = vmatpush1.xpose.msra.mxu0 0.0
    %91 = vmatprep.subr.mxu0 0.0
    %92 = vmatpush1.xpose.msra.mxu0 0.0
    %93 = vmatprep.subr.mxu0 0.0
    %94 = vmatpush1.xpose.msra.mxu0 0.0
    %95 = vmatprep.subr.mxu0 0.0
    %96 = vmatpush1.xpose.msra.mxu0 0.0
    %97 = vmatprep.subr.mxu0 0.0
    %98 = vmatpush1.xpose.msra.mxu0 0.0
    %99 = vmatprep.subr.mxu0 0.0
    %100 = vmatpush1.xpose.msra.mxu0 0.0
    %101 = vmatprep.subr.mxu0 0.0
    %102 = vmatpush1.xpose.msra.mxu0 0.0
    %103 = vmatprep.subr.mxu0 0.0
    %104 = vmatpush1.xpose.msra.mxu0 0.0
    %105 = vmatprep.subr.mxu0 0.0
    %106 = vmatpush1.xpose.msra.mxu0 0.0
    %107 = vmatprep.subr.mxu0 0.0
    %108 = vmatpush1.xpose.msra.mxu0 0.0
    %109 = vmatprep.subr.mxu0 0.0
    %110 = vmatpush1.xpose.msra.mxu0 0.0
    %111 = vmatprep.subr.mxu0 0.0
    %112 = vmatpush1.xpose.msra.mxu0 0.0
    %113 = vmatprep.subr.mxu0 0.0
    %114 = vmatpush1.xpose.msra.mxu0 0.0
    %115 = vmatprep.subr.mxu0 0.0
    %116 = vmatpush1.xpose.msra.mxu0 0.0
    %117 = vmatprep.subr.mxu0 0.0
    %118 = vmatpush1.xpose.msra.mxu0 0.0
    %119 = vmatprep.subr.mxu0 0.0
    %120 = vmatpush1.xpose.msra.mxu0 0.0
    %121 = vmatprep.subr.mxu0 0.0
    %122 = vmatpush1.xpose.msra.mxu0 0.0
    %123 = vmatprep.subr.mxu0 0.0
    %124 = vmatpush1.xpose.msra.mxu0 0.0
    %125 = vmatprep.mubr.f32.mxu0 0.0
    %126 = vmatmul.mubr.f32.gmra.mrb[0].mxu0 %v53
    %v127 = vpop.f32.mrb[0].mxu0
    %v128 = vadd.f32 %v49, %v127
    %v129 = vpop.f32.mrb[0].mxu0
    %130 = vdwg.mxu0
    %vm131 = vcmask 130048
    %132 = vst.msk [vmem:[#allocation7] sm:$0xff] %vm131, %v128
    // Predicated region
    $region22: #{mlp_projection_head.1} parent=1 // pred_check
      _
    $region23: #{mlp_projection_head.1} parent=1 // pred_check_branch
      %134 = sbr.rel (0) target = $region25
    $region24: #{mlp_projection_head.1} parent=1 // pred_region
      %s136 = ssub.s32 128, 128
      %137 = vsyncadd [#allocation4], %s136
      %s139 = sshll.u32 [#allocation7], 4
      %s140 = int_to_ptr.vmem [resolvable:$true] %s139
      %142 = dma.vmem_to_hbm [thread:$0]  %s140, 128, %s3, [#allocation4]
    $region25: #{mlp_projection_head.1} parent=1 // pred_fallthru
      _
    // Predicated region
    $region26: #{mlp_projection_head.1} parent=1 // pred_check
      _
    $region27: #{mlp_projection_head.1} parent=1 // pred_check_branch
      %144 = sbr.rel (0) target = $region29
    $region28: #{mlp_projection_head.1} parent=1 // pred_region
      %145 = dma.done [#allocation4], 128
    $region29: #{mlp_projection_head.1} parent=1 // pred_fallthru
      _
    %146 = vsyncpa [#allocation3], 1
    %147 = vsyncpa [#allocation6], 1
    %148 = vsyncpa [#allocation4], 1

</llo_original>
